<compile_context>
chip_gen: v6e
topology: v6e:2x2x1
jax: 0.10.0
libtpu: 0.0.40
codegen_flags: <defaults>
</compile_context>

<pallas_src>
import jax
import jax.numpy as jnp
from jax.experimental import pallas as pl
from jax.experimental.pallas import tpu as pltpu


def _glu_kernel(a_ref, b_ref, o_ref):
    # a_ref (value half), b_ref (gate half), o_ref: (nb, 1, rb, lb) VMEM tiles.
    a = a_ref[...]
    b = b_ref[...]
    if a.dtype not in (jnp.float32, jnp.bfloat16):
        # fp16/int inputs: compute in f32. f32/bf16 stay in their native dtype
        # (v6e/v7x have bf16 VPU + EUP; halving vreg traffic matters at roofline).
        a = a.astype(jnp.float32)
        b = b.astype(jnp.float32)
    # sigmoid(b) = 1 / (1 + exp(-b)): EUP exp + EUP approx reciprocal
    # (skips the VALU Newton step of a full-precision divide).
    gate = pl.reciprocal(1.0 + jnp.exp(-b), approx=True)
    o_ref[...] = (a * gate).astype(o_ref.dtype)


def _best_lane_width(m_pad):
    """Largest divisor of m_pad that is a multiple of 128 and <= 1024,
    preferring widths that still leave >= 8 (full-sublane) rows."""
    q = m_pad // 128
    divs = set()
    d = 1
    while d * d <= q:
        if q % d == 0:
            divs.add(d)
            divs.add(q // d)
        d += 1
    cands = sorted(128 * d for d in divs if 128 * d <= 1024)  # never empty: 128
    for c in reversed(cands):
        if m_pad // c >= 8:
            return c
    return cands[-1]


def glu(x):
    """x: (N, C, *spatial) with C even. Returns x[:, :C//2] * sigmoid(x[:, C//2:])."""
    shape = x.shape
    N, C = shape[0], shape[1]
    assert C % 2 == 0, "channels dont divide 2!"
    nc = C // 2
    spatial = 1
    for s in shape[2:]:
        spatial *= s
    m = nc * spatial                      # contiguous elements per half, per batch
    itemsize = jnp.dtype(x.dtype).itemsize

    # ---- fold each per-batch half into a lane-dense (rows, lanes) slab -------
    m_pad = -(-m // 128) * 128            # round up to a multiple of 128 lanes
    lanes = _best_lane_width(m_pad)
    rows = m_pad // lanes

    if m_pad == m:
        # contiguous NCHW input: pure-metadata reshape, no HBM copy
        x_view = x.reshape(N, 2, rows, lanes)
    else:
        # not 128-aligned: one extra padding pass beats <128-lane masked stores
        x_view = jnp.pad(x.reshape(N, 2, m), ((0, 0), (0, 0), (0, m_pad - m)))
        x_view = x_view.reshape(N, 2, rows, lanes)

    # ---- tile sizes: ~4 MiB/block; 3 arrays x 2 buffers ~= 24 MiB VMEM -------
    target_elems = (4 * 1024 * 1024) // itemsize
    lb = lanes                                         # full lane extent (<= 1024)
    rb_cap = max(8, (target_elems // lb) // 8 * 8)     # multiple of 8 sublanes
    rb = rows if rows <= rb_cap else rb_cap

    # Batch several N per block when a whole per-batch slab fits in one block,
    # so each grid step still moves one big rectangular DMA.
    if rb == rows:
        nb = max(1, min(N, target_elems // (rows * lb)))
    else:
        nb = 1
    if nb > 1 and N > 1:
        nb = min(nb, -(-N // 2))  # keep >= 2 batch steps so both v7x cores get work

    grid = (pl.cdiv(N, nb), pl.cdiv(rows, rb), pl.cdiv(lanes, lb))
    # NOTE: blocks only stay tiny when the whole problem is tiny (grid == 1 step),
    # so pl.Buffered(3) on the inputs would buy nothing; default double-buffering.

    out_elems = N * rows * lanes
    cost = pl.CostEstimate(
        flops=3 * out_elems,
        transcendentals=2 * out_elems,
        bytes_accessed=3 * out_elems * itemsize,  # read value + gate, write out
    )

    out = pl.pallas_call(
        _glu_kernel,
        out_shape=jax.ShapeDtypeStruct((N, 1, rows, lanes), x.dtype),
        grid_spec=pltpu.PrefetchScalarGridSpec(
            num_scalar_prefetch=0,
            grid=grid,
            in_specs=[
                pl.BlockSpec((nb, 1, rb, lb), lambda n, r, l: (n, 0, r, l)),
                pl.BlockSpec((nb, 1, rb, lb), lambda n, r, l: (n, 1, r, l)),
            ],
            out_specs=pl.BlockSpec((nb, 1, rb, lb), lambda n, r, l: (n, 0, r, l)),
        ),
        compiler_params=pltpu.CompilerParams(
            dimension_semantics=("parallel", "parallel", "parallel"),
            # ~24 MiB double-buffered footprint: raises v5e's 16 MiB default
            # scoped VMEM; equal to the v6e/v7x defaults so safe everywhere.
            vmem_limit_bytes=32 * 1024 * 1024,
        ),
        cost_estimate=cost,
    )(x_view, x_view)

    out = out.reshape(N, m_pad)
    if m_pad != m:
        out = out[:, :m]
    return out.reshape((N, nc) + tuple(shape[2:]))


if __name__ == "__main__":
    key = jax.random.PRNGKey(0)

    # Small NCHW input consistent with the module's forward (C must be even).
    N, C, H, W = 2, 4, 16, 16
    x = jax.random.normal(key, (N, C, H, W), dtype=jnp.float32)
    out = jax.block_until_ready(glu(x))
    nc = C // 2
    ref = x[:, :nc] * jax.nn.sigmoid(x[:, nc:])
    assert out.shape == (N, nc, H, W)
    assert jnp.allclose(out, ref, atol=2e-2, rtol=2e-2), "128-aligned path mismatch"

    # Non-128-aligned spatial size exercises the padded lane-dense path.
    N2, C2, H2, W2 = 2, 4, 7, 7
    x2 = jax.random.normal(jax.random.PRNGKey(0), (N2, C2, H2, W2), dtype=jnp.float32)
    out2 = jax.block_until_ready(glu(x2))
    ref2 = x2[:, : C2 // 2] * jax.nn.sigmoid(x2[:, C2 // 2 :])
    assert out2.shape == ref2.shape
    assert jnp.allclose(out2, ref2, atol=2e-2, rtol=2e-2), "padded path mismatch"

    print("KERNEL_OK")
</pallas_src>

<mosaic_0001>
module attributes {stable_mosaic.version = 11 : i64} {
  func.func @_glu_kernel(%arg0: i32, %arg1: i32, %arg2: i32, %arg3: memref<1x1x1x512xf32, #tpu.memory_space<vmem>>, %arg4: memref<1x1x1x512xf32, #tpu.memory_space<vmem>>, %arg5: memref<1x1x1x512xf32, #tpu.memory_space<vmem>>) attributes {dimension_semantics = [#tpu.dimension_semantics<parallel>, #tpu.dimension_semantics<parallel>, #tpu.dimension_semantics<parallel>], iteration_bounds = array<i64: 2, 1, 1>, scalar_prefetch = 0 : i64, scratch_operands = 0 : i64, tpu.core_type = #tpu.core_type<tc>, window_params = [{transform_indices = @transform_0, window_bounds = array<i64: 1, 1, 1, 512>}, {transform_indices = @transform_1, window_bounds = array<i64: 1, 1, 1, 512>}, {transform_indices = @transform_2, window_bounds = array<i64: 1, 1, 1, 512>}]} {
    %c0 = arith.constant 0 : index
    %c0_0 = arith.constant 0 : index
    %c0_1 = arith.constant 0 : index
    %c0_2 = arith.constant 0 : index
    %0 = vector.load %arg3[%c0, %c0_0, %c0_1, %c0_2] : memref<1x1x1x512xf32, #tpu.memory_space<vmem>>, vector<1x1x1x512xf32>
    %c0_3 = arith.constant 0 : index
    %c0_4 = arith.constant 0 : index
    %c0_5 = arith.constant 0 : index
    %c0_6 = arith.constant 0 : index
    %1 = vector.load %arg4[%c0_3, %c0_4, %c0_5, %c0_6] : memref<1x1x1x512xf32, #tpu.memory_space<vmem>>, vector<1x1x1x512xf32>
    %cst = arith.constant 0.000000e+00 : f32
    %2 = vector.broadcast %cst : f32 to vector<1x1x1x512xf32>
    %3 = arith.subf %2, %1 : vector<1x1x1x512xf32>
    %4 = math.exp %3 : vector<1x1x1x512xf32>
    %cst_7 = arith.constant 1.000000e+00 : f32
    %5 = vector.broadcast %cst_7 : f32 to vector<1x1x1x512xf32>
    %6 = arith.addf %5, %4 : vector<1x1x1x512xf32>
    %7 = tpu.reciprocal %6 {approx = true} : vector<1x1x1x512xf32> -> vector<1x1x1x512xf32>
    %8 = arith.mulf %0, %7 : vector<1x1x1x512xf32>
    %c0_8 = arith.constant 0 : index
    %c0_9 = arith.constant 0 : index
    %c0_10 = arith.constant 0 : index
    %c0_11 = arith.constant 0 : index
    %9 = vector.load %arg5[%c0_8, %c0_9, %c0_10, %c0_11] : memref<1x1x1x512xf32, #tpu.memory_space<vmem>>, vector<1x1x1x512xf32>
    tpu.vector_store %arg5[%c0_8, %c0_9, %c0_10, %c0_11], %8 {strides = array<i32>} : memref<1x1x1x512xf32, #tpu.memory_space<vmem>>, vector<1x1x1x512xf32>,
    return
  }
  func.func @transform_0(%arg0: i32, %arg1: i32, %arg2: i32) -> (i32, i32, i32, i32) {
    %c0_i32 = arith.constant 0 : i32
    %c0_i32_0 = arith.constant 0 : i32
    return %arg0, %c0_i32, %arg1, %arg2 : i32, i32, i32, i32
  }
  func.func @transform_1(%arg0: i32, %arg1: i32, %arg2: i32) -> (i32, i32, i32, i32) {
    %c1_i32 = arith.constant 1 : i32
    %c0_i32 = arith.constant 0 : i32
    return %arg0, %c1_i32, %arg1, %arg2 : i32, i32, i32, i32
  }
  func.func @transform_2(%arg0: i32, %arg1: i32, %arg2: i32) -> (i32, i32, i32, i32) {
    %c0_i32 = arith.constant 0 : i32
    %c0_i32_0 = arith.constant 0 : i32
    return %arg0, %c0_i32, %arg1, %arg2 : i32, i32, i32, i32
  }
}

</mosaic_0001>

<llo_original>
// kernel: tpu_custom_call.1
$region0: #{tpu_custom_call.1}
  #allocation0 [shape = 'u32[]', space=smem, size = 0x4, offset = 0x4, fixed_abs, tag = 'smem constant byte address 0x4 - core index']
  #allocation1 [shape = 'u32[144,128]{1,0:T(1,128)}', space=vmem, size = 0x12000, scoped, tag = 'internal scratch']
  %s0 = inlined_call_operand.hbm [shape: f32[2,2,1,512], index: 0, kind: input, shape index: {}]
  %s1 = inlined_call_operand.hbm [shape: f32[2,2,1,512], index: 1, kind: input, shape index: {}]
  %s2 = inlined_call_operand.hbm [shape: f32[2,1,1,512], index: 2, kind: output, shape index: {}]
  %s3 = sld [smem:[#allocation0]]
  $region49: #{tpu_custom_call.1} parent=0
    _
  %s5 = ssub.s32 1, %s3
  %s6 = scalar_select 0, %s5, %s3
  $region1: #{tpu_custom_call.1} parent=0
    #allocation2 [shape = 'u8[4096]{0}', space=vmem, size = 0x1000, scoped, tag = 'input window, operand 0']
    #allocation3 [shape = 's32[2]{0}', space=sflag, size = 0x8, scoped, tag = 'scoped memory for tpu_custom_call.1']
    #allocation4 [shape = 's32[2]{0}', space=sflag, size = 0x8, scoped, tag = 'scoped memory for tpu_custom_call.1']
    #allocation5 [shape = 'u8[4096]{0}', space=vmem, size = 0x1000, scoped, tag = 'input window, operand 1']
    #allocation6 [shape = 's32[2]{0}', space=sflag, size = 0x8, scoped, tag = 'scoped memory for tpu_custom_call.1']
    #allocation7 [shape = 'u8[4096]{0}', space=vmem, size = 0x1000, scoped, tag = 'output window, operand 0']
    %7 = vsyncpa [#allocation3], 0
    %s8 = scalar_lea.sflag [#allocation3], 1
    %9 = vsyncpa %s8, 0
    %10 = vsyncpa [#allocation6], 0
    %s11 = scalar_lea.sflag [#allocation6], 1
    %12 = vsyncpa %s11, 0
    %13 = vsyncpa [#allocation4], 0
    %s14 = scalar_lea.sflag [#allocation4], 1
    %15 = vsyncpa %s14, 0
    loop: start=0, step=1, limit=4
    $region2: #{tpu_custom_call.1} parent=1 // loop_pre_header
      _
    $region3: #{tpu_custom_call.1} parent=1 // loop_header
      %s17 = sphi 0, %s21
      %p18 = scmp.ge.s32.totalorder %s17, 4
      %s24 = sphi 0, %s43
      %s25 = sphi 0, %s39
      %s26 = sphi 0, %s35
      %s27 = sphi 0, %s24
      %s28 = sphi 0, %s25
      %s29 = sphi 0, %s26
      %s30 = sphi 0, %s27
      %s31 = sphi 0, %s28
      %s32 = sphi 0, %s29
      %s50 = sphi 0, %s52
      %s53 = sphi 0, %s50
      %s54 = sphi 0, %s53
      %s70 = sphi 0, %s54
      %s80 = sphi 0, %s82
      %s83 = sphi 0, %s80
      %s84 = sphi 0, %s83
      %s100 = sphi 0, %s84
      %s110 = sphi 0, %s112
      %s113 = sphi 0, %s110
      %s114 = sphi 0, %s113
      %s130 = sphi 0, %s114
    $region4: #{tpu_custom_call.1} parent=1 // loop_header_branch
      %20 = sbr.rel (%p18) target = $region8
    $region5: #{tpu_custom_call.1} parent=1 // loop_body
      %s22 = ssub.s32 %s17, 1
      %s23 = ssub.s32 %s17, 2
      %s33 = sadd.s32 1, %s26
      %p34 = scmp.ge.s32.totalorder %s33, 1
      %s35 = scalar_select %p34, 0, %s33
      %s36 = sadd.s32 1, %s25
      %s37 = scalar_select %p34, %s36, %s25
      %p38 = scmp.ge.s32.totalorder %s37, 1
      %s39 = scalar_select %p38, 0, %s37
      %s40 = sadd.s32 1, %s24
      %s41 = scalar_select %p38, %s40, %s24
      %p42 = scmp.ge.s32.totalorder %s41, 2
      %s43 = scalar_select %p42, 0, %s41
      %s44 = ssub.s32 %s24, %s43
      %s45 = ssub.s32 %s25, %s39
      %s46 = sor.u32 %s44, %s45
      %s47 = ssub.s32 %s26, %s35
      %s48 = sor.u32 %s46, %s47
      %p49 = scmp.eq.s32.totalorder %s48, 0
      %s51 = sadd.s32 %s50, 1
      %s52 = scalar_select %p49, %s50, %s51
      %p55 = pneg %p49
      %p56 = scmp.eq.s32.totalorder %s17, 1
      %p57 = por %p55, %p56
      %p58 = scmp.ne.s32.totalorder %s50, %s53
      %p59 = scmp.eq.s32.totalorder %s17, 0
      %p60 = por %p58, %p59
      %p61 = scmp.ne.s32.totalorder %s50, %s53
      %p62 = scmp.eq.s32.totalorder %s22, 1
      %p63 = por %p61, %p62
      %p64 = scmp.ne.s32.totalorder %s53, %s54
      %p65 = scmp.eq.s32.totalorder %s22, 0
      %p66 = por %p64, %p65
      %p67 = scmp.ne.s32.totalorder %s53, %s54
      %p68 = scmp.eq.s32.totalorder %s23, 1
      %p69 = por %p67, %p68
      %p71 = scmp.ne.s32.totalorder %s54, %s70
      %p72 = scmp.eq.s32.totalorder %s23, 0
      %p73 = por %p71, %p72
      %s74 = ssub.s32 %s24, %s43
      %s75 = ssub.s32 %s25, %s39
      %s76 = sor.u32 %s74, %s75
      %s77 = ssub.s32 %s26, %s35
      %s78 = sor.u32 %s76, %s77
      %p79 = scmp.eq.s32.totalorder %s78, 0
      %s81 = sadd.s32 %s80, 1
      %s82 = scalar_select %p79, %s80, %s81
      %p85 = pneg %p79
      %p86 = scmp.eq.s32.totalorder %s17, 1
      %p87 = por %p85, %p86
      %p88 = scmp.ne.s32.totalorder %s80, %s83
      %p89 = scmp.eq.s32.totalorder %s17, 0
      %p90 = por %p88, %p89
      %p91 = scmp.ne.s32.totalorder %s80, %s83
      %p92 = scmp.eq.s32.totalorder %s22, 1
      %p93 = por %p91, %p92
      %p94 = scmp.ne.s32.totalorder %s83, %s84
      %p95 = scmp.eq.s32.totalorder %s22, 0
      %p96 = por %p94, %p95
      %p97 = scmp.ne.s32.totalorder %s83, %s84
      %p98 = scmp.eq.s32.totalorder %s23, 1
      %p99 = por %p97, %p98
      %p101 = scmp.ne.s32.totalorder %s84, %s100
      %p102 = scmp.eq.s32.totalorder %s23, 0
      %p103 = por %p101, %p102
      %s104 = ssub.s32 %s24, %s43
      %s105 = ssub.s32 %s25, %s39
      %s106 = sor.u32 %s104, %s105
      %s107 = ssub.s32 %s26, %s35
      %s108 = sor.u32 %s106, %s107
      %p109 = scmp.eq.s32.totalorder %s108, 0
      %s111 = sadd.s32 %s110, 1
      %s112 = scalar_select %p109, %s110, %s111
      %p115 = pneg %p109
      %p116 = scmp.eq.s32.totalorder %s17, 1
      %p117 = por %p115, %p116
      %p118 = scmp.ne.s32.totalorder %s110, %s113
      %p119 = scmp.eq.s32.totalorder %s17, 0
      %p120 = por %p118, %p119
      %p121 = scmp.ne.s32.totalorder %s110, %s113
      %p122 = scmp.eq.s32.totalorder %s22, 1
      %p123 = por %p121, %p122
      %p124 = scmp.ne.s32.totalorder %s113, %s114
      %p125 = scmp.eq.s32.totalorder %s22, 0
      %p126 = por %p124, %p125
      %p127 = scmp.ne.s32.totalorder %s113, %s114
      %p128 = scmp.eq.s32.totalorder %s23, 1
      %p129 = por %p127, %p128
      %p131 = scmp.ne.s32.totalorder %s114, %s130
      %p132 = scmp.eq.s32.totalorder %s23, 0
      %p133 = por %p131, %p132
      %p134 = scmp.le.s32.totalorder 1, %s17
      %p135 = scmp.lt.s32.totalorder %s17, 3
      %p136 = pnand %p134, %p135
      %p137 = pneg %p136
      // Predicated region
      $region9: #{tpu_custom_call.1} parent=5 // pred_check
        _
      $region10: #{tpu_custom_call.1} parent=5 // pred_check_branch
        %139 = sbr.rel (%p136) target = $region12
      $region11: #{tpu_custom_call.1} parent=5 // pred_region
        %s140 = ssub.s32 %s17, 1
      $region12: #{tpu_custom_call.1} parent=5 // pred_fallthru
        _
      %p141 = scmp.lt.s32.totalorder %s17, 2
      // Predicated region
      $region13: #{tpu_custom_call.1} parent=5 // pred_check
        %p142 = pneg %p141
      $region14: #{tpu_custom_call.1} parent=5 // pred_check_branch
        %144 = sbr.rel (%p142) target = $region16
      $region15: #{tpu_custom_call.1} parent=5 // pred_region
        // Predicated region
        $region17: #{tpu_custom_call.1} parent=15 // pred_check
          %p145 = pneg %p60
        $region18: #{tpu_custom_call.1} parent=15 // pred_check_branch
          %147 = sbr.rel (%p145) target = $region20
        $region19: #{tpu_custom_call.1} parent=15 // pred_region
          %s148 = sand.u32 %s50, 1
          %s149 = scalar_lea.sflag [#allocation3], %s148
          %s150 = sand.u32 %s50, 1
          %s151 = smul.addr %s150, 4
          %s152 = scalar_lea.vmem [#allocation2], %s151
          %s153 = smul.u32 4, %s26
          %s155 = ssub.s32 64, 64
          %156 = vsyncadd %s149, %s155
          %s157 = smul.addr %s25, 4
          %s158 = sadd.s32 %s153, %s157
          %s159 = smul.addr %s24, 8
          %s160 = sadd.s32 %s158, %s159
          %s161 = smul.addr %s160, 16
          %s162 = scalar_lea.hbm %s0, %s161
          %s164 = sshll.u32 %s152, 4
          %s165 = int_to_ptr.vmem [resolvable:$true] %s164
          %167 = dma.hbm_to_vmem [thread:$0]  %s162, 64, %s165, %s149
        $region20: #{tpu_custom_call.1} parent=15 // pred_fallthru
          _
        // Predicated region
        $region21: #{tpu_custom_call.1} parent=15 // pred_check
          %p168 = pneg %p90
        $region22: #{tpu_custom_call.1} parent=15 // pred_check_branch
          %170 = sbr.rel (%p168) target = $region24
        $region23: #{tpu_custom_call.1} parent=15 // pred_region
          %s171 = sand.u32 %s80, 1
          %s172 = scalar_lea.sflag [#allocation6], %s171
          %s173 = sand.u32 %s80, 1
          %s174 = smul.addr %s173, 4
          %s175 = scalar_lea.vmem [#allocation5], %s174
          %s176 = smul.u32 4, %s26
          %s178 = ssub.s32 64, 64
          %179 = vsyncadd %s172, %s178
          %s180 = smul.addr %s25, 4
          %s181 = sadd.s32 %s176, %s180
          %s182 = sadd.s32 %s181, 4
          %s183 = smul.addr %s24, 8
          %s184 = sadd.s32 %s182, %s183
          %s185 = smul.addr %s184, 16
          %s186 = scalar_lea.hbm %s1, %s185
          %s188 = sshll.u32 %s175, 4
          %s189 = int_to_ptr.vmem [resolvable:$true] %s188
          %191 = dma.hbm_to_vmem [thread:$0]  %s186, 64, %s189, %s172
        $region24: #{tpu_custom_call.1} parent=15 // pred_fallthru
          _
      $region16: #{tpu_custom_call.1} parent=5 // pred_fallthru
        _
      %p192 = scmp.le.s32.totalorder 1, %s17
      %p193 = scmp.lt.s32.totalorder %s17, 3
      %p194 = pnand %p192, %p193
      %p195 = pneg %p194
      // Predicated region
      $region25: #{tpu_custom_call.1} parent=5 // pred_check
        _
      $region26: #{tpu_custom_call.1} parent=5 // pred_check_branch
        %197 = sbr.rel (%p194) target = $region28
      $region27: #{tpu_custom_call.1} parent=5 // pred_region
        %s198 = ssub.s32 %s17, 1
        %s199 = sand.u32 %s53, 1
        %s200 = scalar_lea.sflag [#allocation3], %s199
        %s201 = sand.u32 %s53, 1
        %s202 = smul.addr %s201, 4
        %s203 = scalar_lea.vmem [#allocation2], %s202
        // Predicated region
        $region29: #{tpu_custom_call.1} parent=27 // pred_check
          %p204 = pneg %p66
        $region30: #{tpu_custom_call.1} parent=27 // pred_check_branch
          %206 = sbr.rel (%p204) target = $region32
        $region31: #{tpu_custom_call.1} parent=27 // pred_region
          %207 = dma.done %s200, 64
        $region32: #{tpu_custom_call.1} parent=27 // pred_fallthru
          _
        %s208 = sand.u32 %s83, 1
        %s209 = scalar_lea.sflag [#allocation6], %s208
        %s210 = sand.u32 %s83, 1
        %s211 = smul.addr %s210, 4
        %s212 = scalar_lea.vmem [#allocation5], %s211
        // Predicated region
        $region33: #{tpu_custom_call.1} parent=27 // pred_check
          %p213 = pneg %p96
        $region34: #{tpu_custom_call.1} parent=27 // pred_check_branch
          %215 = sbr.rel (%p213) target = $region36
        $region35: #{tpu_custom_call.1} parent=27 // pred_region
          %216 = dma.done %s209, 64
        $region36: #{tpu_custom_call.1} parent=27 // pred_fallthru
          _
        %s217 = sand.u32 %s53, 1
        %s218 = scalar_lea.sflag [#allocation3], %s217
        %s219 = sand.u32 %s53, 1
        %s220 = smul.addr %s219, 4
        %s221 = scalar_lea.vmem [#allocation2], %s220
        %p222 = pneg %p66
        %p223 = pneg %p63
        %s224 = sand.u32 %s83, 1
        %s225 = scalar_lea.sflag [#allocation6], %s224
        %s226 = sand.u32 %s83, 1
        %s227 = smul.addr %s226, 4
        %s228 = scalar_lea.vmem [#allocation5], %s227
        %p229 = pneg %p96
        %p230 = pneg %p93
        %p231 = pneg %p126
        %p232 = pneg %p123
        %s233 = sand.u32 %s113, 1
        %s234 = scalar_lea.sflag [#allocation4], %s233
        %s235 = sand.u32 %s113, 1
        %s236 = smul.addr %s235, 4
        %s237 = scalar_lea.vmem [#allocation7], %s236
        %s238 = smul.u32 4, %s29
        %s239 = smul.u32 4, %s29
        %s240 = smul.u32 4, %s29
        %v241 = vld [vmem:[%s203] sm:$0xf]
        %v242 = vld [vmem:[%s212] sm:$0xf]
        %v243 = vsub.f32 0.0, %v242
        %v244 = vmul.f32 %v243, 1.442695
        %v245 = vpow.pop %v244
        %v246 = vadd.f32 %v245, 1.0
        %v247 = vrcp.pop %v246
        %v248 = vmul.f32 %v241, %v247
        %v249 = vlaneseq
        %vm250 = vcmp.ge.s32.totalorder %v249, 0
        %vm251 = vcmp.lt.s32.totalorder %v249, 512
        %vm252 = vmand %vm250, %vm251
        %253 = vst.msk [vmem:[%s237] sm:$0xf] %vm252, %v248
        %s254 = sand.u32 %s113, 1
        %s255 = scalar_lea.sflag [#allocation4], %s254
        %s256 = sand.u32 %s113, 1
        %s257 = smul.addr %s256, 4
        %s258 = scalar_lea.vmem [#allocation7], %s257
        // Predicated region
        $region37: #{tpu_custom_call.1} parent=27 // pred_check
          %p259 = pneg %p123
        $region38: #{tpu_custom_call.1} parent=27 // pred_check_branch
          %261 = sbr.rel (%p259) target = $region40
        $region39: #{tpu_custom_call.1} parent=27 // pred_region
          %s262 = smul.u32 4, %s29
          %s264 = ssub.s32 64, 64
          %265 = vsyncadd %s255, %s264
          %s266 = smul.addr %s28, 4
          %s267 = sadd.s32 %s262, %s266
          %s268 = smul.addr %s27, 4
          %s269 = sadd.s32 %s267, %s268
          %s270 = smul.addr %s269, 16
          %s271 = scalar_lea.hbm %s2, %s270
          %s273 = sshll.u32 %s258, 4
          %s274 = int_to_ptr.vmem [resolvable:$true] %s273
          %276 = dma.vmem_to_hbm [thread:$0]  %s274, 64, %s271, %s255
        $region40: #{tpu_custom_call.1} parent=27 // pred_fallthru
          _
      $region28: #{tpu_custom_call.1} parent=5 // pred_fallthru
        _
      %p277 = scmp.le.s32.totalorder 2, %s17
      // Predicated region
      $region41: #{tpu_custom_call.1} parent=5 // pred_check
        %p278 = pneg %p277
      $region42: #{tpu_custom_call.1} parent=5 // pred_check_branch
        %280 = sbr.rel (%p278) target = $region44
      $region43: #{tpu_custom_call.1} parent=5 // pred_region
        %s281 = ssub.s32 %s17, 2
        // Predicated region
        $region45: #{tpu_custom_call.1} parent=43 // pred_check
          %p282 = pneg %p129
        $region46: #{tpu_custom_call.1} parent=43 // pred_check_branch
          %284 = sbr.rel (%p282) target = $region48
        $region47: #{tpu_custom_call.1} parent=43 // pred_region
          %s285 = sand.u32 %s114, 1
          %s286 = scalar_lea.sflag [#allocation4], %s285
          %s287 = sand.u32 %s114, 1
          %s288 = smul.addr %s287, 4
          %s289 = scalar_lea.vmem [#allocation7], %s288
          %290 = dma.done %s286, 64
        $region48: #{tpu_custom_call.1} parent=43 // pred_fallthru
          _
      $region44: #{tpu_custom_call.1} parent=5 // pred_fallthru
        _
    $region6: #{tpu_custom_call.1} parent=1 // loop_footer
      %s21 = sadd.s32 1, %s17
    $region7: #{tpu_custom_call.1} parent=1 // loop_footer_branch
      %16 = sbr.rel target = $region3
    $region8: #{tpu_custom_call.1} parent=1 // loop_exit
      _
    %291 = vsyncpa [#allocation3], 1
    %s292 = scalar_lea.sflag [#allocation3], 1
    %293 = vsyncpa %s292, 1
    %294 = vsyncpa [#allocation6], 1
    %s295 = scalar_lea.sflag [#allocation6], 1
    %296 = vsyncpa %s295, 1
    %297 = vsyncpa [#allocation4], 1
    %s298 = scalar_lea.sflag [#allocation4], 1
    %299 = vsyncpa %s298, 1

</llo_original>
